<compile_context>
chip_gen: v5e
topology: v5e:2x2
jax: 0.10.0
libtpu: 0.0.40
codegen_flags: <defaults>
</compile_context>

<pallas_src>
import math

import jax
import jax.numpy as jnp
from jax.experimental import pallas as pl
from jax.experimental.pallas import tpu as pltpu

IN_DIM = 784        # forward() hard-codes x.view(-1, 784)
HIDDEN_DIM = 100
HIDDEN_PAD = 128    # hidden dim zero-padded to one full 128-lane vreg
OUT_DIM = 10
OUT_PAD = 128       # output lanes padded to a full vreg (lane-dense stores)
DEFAULT_TM = 1024   # batch tile; ~3.1 MiB f32 x tile, fits all generations


def _round_up(n: int, m: int) -> int:
    return ((n + m - 1) // m) * m


def mlp_kernel(x_ref, w1_ref, w2_ref, w3_ref, o_ref):
    """One batch tile: relu(x@W1t) -> relu(.@W2t) -> .@W3t, f32 accumulation."""
    # f32 -> bf16 cast in-kernel (VPU slack) instead of a separate XLA cast op.
    x = x_ref[...].astype(w1_ref.dtype)                          # (TM, 784) bf16
    h1 = jnp.dot(x, w1_ref[...], preferred_element_type=jnp.float32)
    h1 = jnp.maximum(h1, 0.0).astype(w2_ref.dtype)               # F.relu
    h2 = jnp.dot(h1, w2_ref[...], preferred_element_type=jnp.float32)
    h2 = jnp.maximum(h2, 0.0).astype(w3_ref.dtype)               # F.relu
    logits = jnp.dot(h2, w3_ref[...], preferred_element_type=jnp.float32)
    o_ref[...] = logits.astype(o_ref.dtype)                      # (TM, 128)


def prepare_params(w_fc1, w_fc2, w_last, dtype=jnp.bfloat16):
    """One-time weight prep (outside the hot path): transpose PyTorch-layout
    (out, in) weights to (in, out), zero-pad hidden 100 -> 128 and output
    10 -> 128, cast to the matmul input dtype.  Zero padding keeps results
    identical: padded h1/h2 lanes are 0 after ReLU, padded W3 rows/cols are 0,
    and the wrapper slices the padded logits columns away."""
    w1t = jnp.zeros((IN_DIM, HIDDEN_PAD), jnp.float32).at[:, :HIDDEN_DIM].set(w_fc1.T)
    w2t = (jnp.zeros((HIDDEN_PAD, HIDDEN_PAD), jnp.float32)
           .at[:HIDDEN_DIM, :HIDDEN_DIM].set(w_fc2.T))
    w3t = (jnp.zeros((HIDDEN_PAD, OUT_PAD), jnp.float32)
           .at[:HIDDEN_DIM, :OUT_DIM].set(w_last.T))
    return w1t.astype(dtype), w2t.astype(dtype), w3t.astype(dtype)


def _choose_tm(b: int, tm_max: int) -> int:
    """Pick the batch tile.  Tiny batches -> one block equal to the full batch
    (block dim == array dim is always legal).  Otherwise guarantee >=2 grid
    blocks (so v7x's two TensorCores both get work), sublane-aligned, capped
    at tm_max."""
    if b < 32:
        return b
    half = _round_up(pl.cdiv(b, 2), 16)
    return max(16, min(tm_max, half))


def mlp_forward(x, w1t, w2t, w3t, *, tm=DEFAULT_TM):
    """x: any shape with IN_DIM elems/sample (mirrors x.view(-1, 784)), f32.
    w1t/w2t/w3t: outputs of prepare_params (already transposed/padded/cast)."""
    x2 = x.reshape(-1, IN_DIM)                   # x.view(-1, 784)
    b = x2.shape[0]

    tm = _choose_tm(b, tm)
    grid = (pl.cdiv(b, tm),)                     # partial last block is masked

    cost = pl.CostEstimate(
        flops=2 * b * (IN_DIM * HIDDEN_PAD
                       + HIDDEN_PAD * HIDDEN_PAD
                       + HIDDEN_PAD * OUT_PAD),
        transcendentals=0,
        bytes_accessed=(b * IN_DIM * x2.dtype.itemsize
                        + w1t.size * w1t.dtype.itemsize
                        + w2t.size * w2t.dtype.itemsize
                        + w3t.size * w3t.dtype.itemsize
                        + b * OUT_PAD * 4))

    out = pl.pallas_call(
        mlp_kernel,
        out_shape=jax.ShapeDtypeStruct((b, OUT_PAD), jnp.float32),
        grid=grid,
        in_specs=[
            pl.BlockSpec((tm, IN_DIM), lambda i: (i, 0)),              # x tile (pipelined)
            pl.BlockSpec((IN_DIM, HIDDEN_PAD), lambda i: (0, 0)),      # W1t resident
            pl.BlockSpec((HIDDEN_PAD, HIDDEN_PAD), lambda i: (0, 0)),  # W2t resident
            pl.BlockSpec((HIDDEN_PAD, OUT_PAD), lambda i: (0, 0)),     # W3t resident
        ],
        out_specs=pl.BlockSpec((tm, OUT_PAD), lambda i: (i, 0)),       # lane-dense
        compiler_params=pltpu.CompilerParams(
            dimension_semantics=("parallel",),
            vmem_limit_bytes=32 * 1024 * 1024),
        cost_estimate=cost,
    )(x2, w1t, w2t, w3t)
    return out[:, :OUT_DIM]


def init_params(key):
    """Deterministic init matching nn.Linear default (U(-1/sqrt(fan_in), +))."""
    k1, k2, k3 = jax.random.split(key, 3)

    def linear_w(k, out_f, in_f):
        bound = 1.0 / math.sqrt(in_f)
        return jax.random.uniform(k, (out_f, in_f), jnp.float32, -bound, bound)

    w_fc1 = linear_w(k1, HIDDEN_DIM, IN_DIM)      # fc1:  784 -> 100, no bias
    w_fc2 = linear_w(k2, HIDDEN_DIM, HIDDEN_DIM)  # fc2:  100 -> 100, no bias
    w_last = linear_w(k3, OUT_DIM, HIDDEN_DIM)    # last: 100 -> 10,  no bias
    return w_fc1, w_fc2, w_last


def mlp_reference(x, w_fc1, w_fc2, w_last, *, match_bf16=False):
    """Pure-JAX reference.  match_bf16=True mirrors the kernel's bf16 matmul
    inputs (with f32 accumulation); False is the exact f32 PyTorch-module
    semantics (bf16 is a deliberate inference-precision tradeoff)."""
    def q(a):
        a = a.astype(jnp.float32)
        return a.astype(jnp.bfloat16).astype(jnp.float32) if match_bf16 else a

    x2 = q(x.reshape(-1, IN_DIM))
    w1, w2, w3 = q(w_fc1.T), q(w_fc2.T), q(w_last.T)
    h1 = q(jnp.maximum(x2 @ w1, 0.0))
    h2 = q(jnp.maximum(h1 @ w2, 0.0))
    return h2 @ w3


if __name__ == "__main__":
    key = jax.random.PRNGKey(0)
    k_x, k_p = jax.random.split(key)

    # MNIST-like input: batch=2, NCHW (2, 1, 28, 28) -> view(-1, 784)
    x = jax.random.normal(k_x, (2, 1, 28, 28), jnp.float32)
    w_fc1, w_fc2, w_last = init_params(k_p)

    # One-time weight prep (transpose + pad + bf16 cast), then the hot call.
    w1t, w2t, w3t = prepare_params(w_fc1, w_fc2, w_last)
    out = mlp_forward(x, w1t, w2t, w3t)
    out = jax.block_until_ready(out)

    ref_bf16 = mlp_reference(x, w_fc1, w_fc2, w_last, match_bf16=True)
    ref_f32 = mlp_reference(x, w_fc1, w_fc2, w_last, match_bf16=False)

    assert out.shape == (2, OUT_DIM)
    assert jnp.allclose(out, ref_bf16, atol=1e-3, rtol=1e-3)   # matches bf16-input math
    assert jnp.allclose(out, ref_f32, atol=5e-2, rtol=5e-2)    # semantics vs f32 module

    # Exercise the ragged-batch / multi-block path (partial last block masked,
    # >=2 grid blocks for v7x megacore) on a slightly larger batch.
    xb = jax.random.normal(k_x, (100, 1, 28, 28), jnp.float32)
    outb = jax.block_until_ready(mlp_forward(xb, w1t, w2t, w3t))
    refb = mlp_reference(xb, w_fc1, w_fc2, w_last, match_bf16=True)
    assert outb.shape == (100, OUT_DIM)
    assert jnp.allclose(outb, refb, atol=1e-3, rtol=1e-3)

    print("KERNEL_OK")
</pallas_src>

<mosaic_0001>
module attributes {stable_mosaic.version = 11 : i64} {
  func.func @mlp_kernel(%arg0: i32, %arg1: memref<2x784xf32, #tpu.memory_space<vmem>>, %arg2: memref<784x128xbf16, #tpu.memory_space<vmem>>, %arg3: memref<128x128xbf16, #tpu.memory_space<vmem>>, %arg4: memref<128x128xbf16, #tpu.memory_space<vmem>>, %arg5: memref<2x128xf32, #tpu.memory_space<vmem>>) attributes {dimension_semantics = [#tpu.dimension_semantics<parallel>], iteration_bounds = array<i64: 1>, scalar_prefetch = 0 : i64, scratch_operands = 0 : i64, tpu.core_type = #tpu.core_type<tc>, window_params = [{transform_indices = @transform_0, window_bounds = array<i64: 2, 784>}, {pipeline_mode = #tpu.pipeline_mode<synchronous>, transform_indices = @transform_1, window_bounds = array<i64: 784, 128>}, {pipeline_mode = #tpu.pipeline_mode<synchronous>, transform_indices = @transform_2, window_bounds = array<i64: 128, 128>}, {pipeline_mode = #tpu.pipeline_mode<synchronous>, transform_indices = @transform_3, window_bounds = array<i64: 128, 128>}, {transform_indices = @transform_4, window_bounds = array<i64: 2, 128>}]} {
    %c0 = arith.constant 0 : index
    %c0_0 = arith.constant 0 : index
    %0 = vector.load %arg1[%c0, %c0_0] : memref<2x784xf32, #tpu.memory_space<vmem>>, vector<2x784xf32>
    %1 = arith.truncf %0 : vector<2x784xf32> to vector<2x784xbf16>
    %c0_1 = arith.constant 0 : index
    %c0_2 = arith.constant 0 : index
    %2 = vector.load %arg2[%c0_1, %c0_2] : memref<784x128xbf16, #tpu.memory_space<vmem>>, vector<784x128xbf16>
    %cst = arith.constant dense<0.000000e+00> : vector<2x128xf32>
    %3 = tpu.matmul %1, %2, %cst {dimension_numbers = #tpu.dot_dimension_numbers<[1], [0], [0], [1], [0, 0, 1, 1], [], []>} : vector<2x784xbf16>, vector<784x128xbf16>, vector<2x128xf32> -> vector<2x128xf32>
    %cst_3 = arith.constant 0.000000e+00 : f32
    %4 = vector.broadcast %cst_3 : f32 to vector<2x128xf32>
    %5 = arith.maximumf %3, %4 : vector<2x128xf32>
    %6 = arith.truncf %5 : vector<2x128xf32> to vector<2x128xbf16>
    %c0_4 = arith.constant 0 : index
    %c0_5 = arith.constant 0 : index
    %7 = vector.load %arg3[%c0_4, %c0_5] : memref<128x128xbf16, #tpu.memory_space<vmem>>, vector<128x128xbf16>
    %cst_6 = arith.constant dense<0.000000e+00> : vector<2x128xf32>
    %8 = tpu.matmul %6, %7, %cst_6 {dimension_numbers = #tpu.dot_dimension_numbers<[1], [0], [0], [1], [0, 0, 1, 1], [], []>} : vector<2x128xbf16>, vector<128x128xbf16>, vector<2x128xf32> -> vector<2x128xf32>
    %cst_7 = arith.constant 0.000000e+00 : f32
    %9 = vector.broadcast %cst_7 : f32 to vector<2x128xf32>
    %10 = arith.maximumf %8, %9 : vector<2x128xf32>
    %11 = arith.truncf %10 : vector<2x128xf32> to vector<2x128xbf16>
    %c0_8 = arith.constant 0 : index
    %c0_9 = arith.constant 0 : index
    %12 = vector.load %arg4[%c0_8, %c0_9] : memref<128x128xbf16, #tpu.memory_space<vmem>>, vector<128x128xbf16>
    %cst_10 = arith.constant dense<0.000000e+00> : vector<2x128xf32>
    %13 = tpu.matmul %11, %12, %cst_10 {dimension_numbers = #tpu.dot_dimension_numbers<[1], [0], [0], [1], [0, 0, 1, 1], [], []>} : vector<2x128xbf16>, vector<128x128xbf16>, vector<2x128xf32> -> vector<2x128xf32>
    %c0_11 = arith.constant 0 : index
    %c0_12 = arith.constant 0 : index
    %14 = vector.load %arg5[%c0_11, %c0_12] : memref<2x128xf32, #tpu.memory_space<vmem>>, vector<2x128xf32>
    tpu.vector_store %arg5[%c0_11, %c0_12], %13 {strides = array<i32>} : memref<2x128xf32, #tpu.memory_space<vmem>>, vector<2x128xf32>,
    return
  }
  func.func @transform_0(%arg0: i32) -> (i32, i32) {
    %c0_i32 = arith.constant 0 : i32
    %c0_i32_0 = arith.constant 0 : i32
    return %arg0, %c0_i32 : i32, i32
  }
  func.func @transform_1(%arg0: i32) -> (i32, i32) {
    %c0_i32 = arith.constant 0 : i32
    %c0_i32_0 = arith.constant 0 : i32
    %c0_i32_1 = arith.constant 0 : i32
    return %c0_i32, %c0_i32_0 : i32, i32
  }
  func.func @transform_2(%arg0: i32) -> (i32, i32) {
    %c0_i32 = arith.constant 0 : i32
    %c0_i32_0 = arith.constant 0 : i32
    %c0_i32_1 = arith.constant 0 : i32
    return %c0_i32, %c0_i32_0 : i32, i32
  }
  func.func @transform_3(%arg0: i32) -> (i32, i32) {
    %c0_i32 = arith.constant 0 : i32
    %c0_i32_0 = arith.constant 0 : i32
    %c0_i32_1 = arith.constant 0 : i32
    return %c0_i32, %c0_i32_0 : i32, i32
  }
  func.func @transform_4(%arg0: i32) -> (i32, i32) {
    %c0_i32 = arith.constant 0 : i32
    %c0_i32_0 = arith.constant 0 : i32
    return %arg0, %c0_i32 : i32, i32
  }
}

</mosaic_0001>

<llo_original>
// kernel: tpu_custom_call.1
$region0: #{tpu_custom_call.1}
  #allocation0 [shape = 'u32[]', space=smem, size = 0x4, offset = 0x4, fixed_abs, tag = 'smem constant byte address 0x4 - core index']
  #allocation1 [shape = 'u32[72,128]{1,0:T(1,128)}', space=vmem, size = 0x9000, scoped, tag = 'internal scratch']
  %s0 = inlined_call_operand.hbm [shape: f32[2,784], index: 0, kind: input, shape index: {}]
  %s1 = inlined_call_operand.hbm [shape: bf16[784,128], index: 1, kind: input, shape index: {}]
  %s2 = inlined_call_operand.hbm [shape: bf16[128,128], index: 2, kind: input, shape index: {}]
  %s3 = inlined_call_operand.hbm [shape: bf16[128,128], index: 3, kind: input, shape index: {}]
  %s4 = inlined_call_operand.hbm [shape: f32[2,128], index: 4, kind: output, shape index: {}]
  %s5 = sld [smem:[#allocation0]]
  $region42: #{tpu_custom_call.1} parent=0
    _
  %s7 = ssub.s32 1, %s5
  %s8 = scalar_select 0, %s7, %s5
  $region1: #{tpu_custom_call.1} parent=0
    #allocation2 [shape = 'u8[7168]{0}', space=vmem, size = 0x1c00, scoped, tag = 'input window, operand 0, single buffered']
    #allocation3 [shape = 's32[1]{0}', space=sflag, size = 0x4, scoped, tag = 'scoped memory for tpu_custom_call.1']
    #allocation4 [shape = 's32[1]{0}', space=sflag, size = 0x4, scoped, tag = 'scoped memory for tpu_custom_call.1']
    #allocation5 [shape = 'u8[200704]{0}', space=vmem, size = 0x31000, scoped, tag = 'input window, operand 1, single buffered']
    #allocation6 [shape = 's32[1]{0}', space=sflag, size = 0x4, scoped, tag = 'scoped memory for tpu_custom_call.1']
    #allocation7 [shape = 'u8[32768]{0}', space=vmem, size = 0x8000, scoped, tag = 'input window, operand 2, single buffered']
    #allocation8 [shape = 'u8[32768]{0}', space=vmem, size = 0x8000, scoped, tag = 'input window, operand 3, single buffered']
    #allocation9 [shape = 's32[1]{0}', space=sflag, size = 0x4, scoped, tag = 'scoped memory for tpu_custom_call.1']
    #allocation10 [shape = 'u8[1024]{0}', space=vmem, size = 0x400, scoped, tag = 'output window, operand 0, single buffered']
    %9 = vsyncpa [#allocation3], 0
    %10 = vsyncpa [#allocation6], 0
    %11 = vsyncpa [#allocation9], 0
    %12 = vsyncpa [#allocation4], 0
    // Predicated region
    $region2: #{tpu_custom_call.1} parent=1 // pred_check
      _
    $region3: #{tpu_custom_call.1} parent=1 // pred_check_branch
      %14 = sbr.rel (0) target = $region5
    $region4: #{tpu_custom_call.1} parent=1 // pred_region
      %16 = vsyncadd [#allocation3], 0
      %s18 = sshll.u32 %s0, 4
      %s19 = int_to_ptr.hbm [resolvable:$true] %s18
      %s20 = sshll.u32 [#allocation2], 4
      %s21 = int_to_ptr.vmem [resolvable:$true] %s20
      %23 = dma.hbm_to_vmem [thread:$0]  %s19, 224, %s21, [#allocation3]
    $region5: #{tpu_custom_call.1} parent=1 // pred_fallthru
      _
    // Predicated region
    $region6: #{tpu_custom_call.1} parent=1 // pred_check
      _
    $region7: #{tpu_custom_call.1} parent=1 // pred_check_branch
      %25 = sbr.rel (0) target = $region9
    $region8: #{tpu_custom_call.1} parent=1 // pred_region
      %27 = vsyncadd [#allocation6], 0
      %s28 = sshll.u32 %s1, 4
      %s29 = int_to_ptr.hbm [resolvable:$true] %s28
      %s30 = sshll.u32 [#allocation5], 4
      %s31 = int_to_ptr.vmem [resolvable:$true] %s30
      %36 = dma.hbm_to_vmem [thread:$0]  %s29, 6272, %s31, [#allocation6], 64, 64, 4
    $region9: #{tpu_custom_call.1} parent=1 // pred_fallthru
      _
    // Predicated region
    $region10: #{tpu_custom_call.1} parent=1 // pred_check
      _
    $region11: #{tpu_custom_call.1} parent=1 // pred_check_branch
      %38 = sbr.rel (0) target = $region13
    $region12: #{tpu_custom_call.1} parent=1 // pred_region
      %40 = vsyncadd [#allocation6], 0
      %s41 = sshll.u32 %s2, 4
      %s42 = int_to_ptr.hbm [resolvable:$true] %s41
      %s43 = sshll.u32 [#allocation7], 4
      %s44 = int_to_ptr.vmem [resolvable:$true] %s43
      %49 = dma.hbm_to_vmem [thread:$0]  %s42, 1024, %s44, [#allocation6], 64, 64, 4
    $region13: #{tpu_custom_call.1} parent=1 // pred_fallthru
      _
    // Predicated region
    $region14: #{tpu_custom_call.1} parent=1 // pred_check
      _
    $region15: #{tpu_custom_call.1} parent=1 // pred_check_branch
      %51 = sbr.rel (0) target = $region17
    $region16: #{tpu_custom_call.1} parent=1 // pred_region
      %53 = vsyncadd [#allocation9], 0
      %s54 = sshll.u32 %s3, 4
      %s55 = int_to_ptr.hbm [resolvable:$true] %s54
      %s56 = sshll.u32 [#allocation8], 4
      %s57 = int_to_ptr.vmem [resolvable:$true] %s56
      %62 = dma.hbm_to_vmem [thread:$0]  %s55, 1024, %s57, [#allocation9], 64, 64, 4
    $region17: #{tpu_custom_call.1} parent=1 // pred_fallthru
      _
    // Predicated region
    $region18: #{tpu_custom_call.1} parent=1 // pred_check
      _
    $region19: #{tpu_custom_call.1} parent=1 // pred_check_branch
      %64 = sbr.rel (0) target = $region21
    $region20: #{tpu_custom_call.1} parent=1 // pred_region
      %66 = dma.done [#allocation3], 224
    $region21: #{tpu_custom_call.1} parent=1 // pred_fallthru
      _
    // Predicated region
    $region22: #{tpu_custom_call.1} parent=1 // pred_check
      _
    $region23: #{tpu_custom_call.1} parent=1 // pred_check_branch
      %68 = sbr.rel (0) target = $region25
    $region24: #{tpu_custom_call.1} parent=1 // pred_region
      %70 = dma.done [#allocation6], 6272
    $region25: #{tpu_custom_call.1} parent=1 // pred_fallthru
      _
    // Predicated region
    $region26: #{tpu_custom_call.1} parent=1 // pred_check
      _
    $region27: #{tpu_custom_call.1} parent=1 // pred_check_branch
      %72 = sbr.rel (0) target = $region29
    $region28: #{tpu_custom_call.1} parent=1 // pred_region
      %74 = dma.done [#allocation6], 1024
    $region29: #{tpu_custom_call.1} parent=1 // pred_fallthru
      _
    // Predicated region
    $region30: #{tpu_custom_call.1} parent=1 // pred_check
      _
    $region31: #{tpu_custom_call.1} parent=1 // pred_check_branch
      %76 = sbr.rel (0) target = $region33
    $region32: #{tpu_custom_call.1} parent=1 // pred_region
      %78 = dma.done [#allocation9], 1024
    $region33: #{tpu_custom_call.1} parent=1 // pred_fallthru
      _
    %v80 = vld [vmem:[#allocation2] sm:$0xff]
    %v81 = vld [vmem:[#allocation2 + $0x8] sm:$0x3f]
    %84 = vst [vmem:[#allocation1] ss:$4 sm:$0xff] %v80
    %s85 = scalar_lea.vmem [#allocation1], 32
    %86 = vst [vmem:[%s85] ss:$4 sm:$0xff] %v81
    %v87 = vld.sshfl [vmem:[#allocation1] sm:$0xff pattern:$0x73625140]
    %v88 = vld.sshfl [vmem:[#allocation1 + $0x8] sm:$0xff pattern:$0x73625140]
    %v89 = vld.sshfl [vmem:[#allocation1 + $0x10] sm:$0xff pattern:$0x73625140]
    %v90 = vld.sshfl [vmem:[#allocation1 + $0x18] sm:$0xff pattern:$0x73625140]
    %v91 = vld.sshfl [vmem:[#allocation1 + $0x20] sm:$0xff pattern:$0x73625140]
    %v92 = vld.sshfl [vmem:[#allocation1 + $0x28] sm:$0xff pattern:$0x73625140]
    %v93 = vld.sshfl [vmem:[#allocation1 + $0x30] sm:$0xff pattern:$0x73625140]
    %v101 = vpack.c.bf16 %v87, %v87
    %v102 = vpack.c.bf16 %v88, %v88
    %v103 = vpack.c.bf16 %v89, %v89
    %v104 = vpack.c.bf16 %v90, %v90
    %v105 = vpack.c.bf16 %v91, %v91
    %v106 = vpack.c.bf16 %v92, %v92
    %v107 = vpack.c.bf16 %v93, %v93
    %v108 = vld [vmem:[#allocation5] sm:$0xf]
    %v109 = vld [vmem:[#allocation5 + $0x4] sm:$0xf]
    %v110 = vld [vmem:[#allocation5 + $0x8] sm:$0xf]
    %v111 = vld [vmem:[#allocation5 + $0xc] sm:$0xf]
    %v112 = vld [vmem:[#allocation5 + $0x10] sm:$0xf]
    %v113 = vld [vmem:[#allocation5 + $0x14] sm:$0xf]
    %v114 = vld [vmem:[#allocation5 + $0x18] sm:$0xf]
    %v115 = vld [vmem:[#allocation5 + $0x1c] sm:$0xf]
    %v116 = vld [vmem:[#allocation5 + $0x20] sm:$0xf]
    %v117 = vld [vmem:[#allocation5 + $0x24] sm:$0xf]
    %v118 = vld [vmem:[#allocation5 + $0x28] sm:$0xf]
    %v119 = vld [vmem:[#allocation5 + $0x2c] sm:$0xf]
    %v120 = vld [vmem:[#allocation5 + $0x30] sm:$0xf]
    %v121 = vld [vmem:[#allocation5 + $0x34] sm:$0xf]
    %v122 = vld [vmem:[#allocation5 + $0x38] sm:$0xf]
    %v123 = vld [vmem:[#allocation5 + $0x3c] sm:$0xf]
    %v124 = vld [vmem:[#allocation5 + $0x40] sm:$0xf]
    %v125 = vld [vmem:[#allocation5 + $0x44] sm:$0xf]
    %v126 = vld [vmem:[#allocation5 + $0x48] sm:$0xf]
    %v127 = vld [vmem:[#allocation5 + $0x4c] sm:$0xf]
    %v128 = vld [vmem:[#allocation5 + $0x50] sm:$0xf]
    %v129 = vld [vmem:[#allocation5 + $0x54] sm:$0xf]
    %v130 = vld [vmem:[#allocation5 + $0x58] sm:$0xf]
    %v131 = vld [vmem:[#allocation5 + $0x5c] sm:$0xf]
    %v132 = vld [vmem:[#allocation5 + $0x60] sm:$0xf]
    %v133 = vld [vmem:[#allocation5 + $0x64] sm:$0xf]
    %v134 = vld [vmem:[#allocation5 + $0x68] sm:$0xf]
    %v135 = vld [vmem:[#allocation5 + $0x6c] sm:$0xf]
    %v136 = vld [vmem:[#allocation5 + $0x70] sm:$0xf]
    %v137 = vld [vmem:[#allocation5 + $0x74] sm:$0xf]
    %v138 = vld [vmem:[#allocation5 + $0x78] sm:$0xf]
    %v139 = vld [vmem:[#allocation5 + $0x7c] sm:$0xf]
    %v140 = vld [vmem:[#allocation5 + $0x80] sm:$0xf]
    %v141 = vld [vmem:[#allocation5 + $0x84] sm:$0xf]
    %v142 = vld [vmem:[#allocation5 + $0x88] sm:$0xf]
    %v143 = vld [vmem:[#allocation5 + $0x8c] sm:$0xf]
    %v144 = vld [vmem:[#allocation5 + $0x90] sm:$0xf]
    %v145 = vld [vmem:[#allocation5 + $0x94] sm:$0xf]
    %v146 = vld [vmem:[#allocation5 + $0x98] sm:$0xf]
    %v147 = vld [vmem:[#allocation5 + $0x9c] sm:$0xf]
    %v148 = vld [vmem:[#allocation5 + $0xa0] sm:$0xf]
    %v149 = vld [vmem:[#allocation5 + $0xa4] sm:$0xf]
    %v150 = vld [vmem:[#allocation5 + $0xa8] sm:$0xf]
    %v151 = vld [vmem:[#allocation5 + $0xac] sm:$0xf]
    %v152 = vld [vmem:[#allocation5 + $0xb0] sm:$0xf]
    %v153 = vld [vmem:[#allocation5 + $0xb4] sm:$0xf]
    %v154 = vld [vmem:[#allocation5 + $0xb8] sm:$0xf]
    %v155 = vld [vmem:[#allocation5 + $0xbc] sm:$0xf]
    %v156 = vld [vmem:[#allocation5 + $0xc0] sm:$0xf]
    %v157 = vld [vmem:[#allocation5 + $0xc4] sm:$0xf]
    %v158 = vld [vmem:[#allocation5 + $0xc8] sm:$0xf]
    %v159 = vld [vmem:[#allocation5 + $0xcc] sm:$0xf]
    %v160 = vld [vmem:[#allocation5 + $0xd0] sm:$0xf]
    %v161 = vld [vmem:[#allocation5 + $0xd4] sm:$0xf]
    %v162 = vld [vmem:[#allocation5 + $0xd8] sm:$0xf]
    %v163 = vld [vmem:[#allocation5 + $0xdc] sm:$0xf]
    %v164 = vld [vmem:[#allocation5 + $0xe0] sm:$0xf]
    %v165 = vld [vmem:[#allocation5 + $0xe4] sm:$0xf]
    %v166 = vld [vmem:[#allocation5 + $0xe8] sm:$0xf]
    %v167 = vld [vmem:[#allocation5 + $0xec] sm:$0xf]
    %v168 = vld [vmem:[#allocation5 + $0xf0] sm:$0xf]
    %v169 = vld [vmem:[#allocation5 + $0xf4] sm:$0xf]
    %v170 = vld [vmem:[#allocation5 + $0xf8] sm:$0xf]
    %v171 = vld [vmem:[#allocation5 + $0xfc] sm:$0xf]
    %v172 = vld [vmem:[#allocation5 + $0x100] sm:$0xf]
    %v173 = vld [vmem:[#allocation5 + $0x104] sm:$0xf]
    %v174 = vld [vmem:[#allocation5 + $0x108] sm:$0xf]
    %v175 = vld [vmem:[#allocation5 + $0x10c] sm:$0xf]
    %v176 = vld [vmem:[#allocation5 + $0x110] sm:$0xf]
    %v177 = vld [vmem:[#allocation5 + $0x114] sm:$0xf]
    %v178 = vld [vmem:[#allocation5 + $0x118] sm:$0xf]
    %v179 = vld [vmem:[#allocation5 + $0x11c] sm:$0xf]
    %v180 = vld [vmem:[#allocation5 + $0x120] sm:$0xf]
    %v181 = vld [vmem:[#allocation5 + $0x124] sm:$0xf]
    %v182 = vld [vmem:[#allocation5 + $0x128] sm:$0xf]
    %v183 = vld [vmem:[#allocation5 + $0x12c] sm:$0xf]
    %v184 = vld [vmem:[#allocation5 + $0x130] sm:$0xf]
    %v185 = vld [vmem:[#allocation5 + $0x134] sm:$0xf]
    %v186 = vld [vmem:[#allocation5 + $0x138] sm:$0xf]
    %v187 = vld [vmem:[#allocation5 + $0x13c] sm:$0xf]
    %v188 = vld [vmem:[#allocation5 + $0x140] sm:$0xf]
    %v189 = vld [vmem:[#allocation5 + $0x144] sm:$0xf]
    %v190 = vld [vmem:[#allocation5 + $0x148] sm:$0xf]
    %v191 = vld [vmem:[#allocation5 + $0x14c] sm:$0xf]
    %v192 = vld [vmem:[#allocation5 + $0x150] sm:$0xf]
    %v193 = vld [vmem:[#allocation5 + $0x154] sm:$0xf]
    %v194 = vld [vmem:[#allocation5 + $0x158] sm:$0xf]
    %v195 = vld [vmem:[#allocation5 + $0x15c] sm:$0xf]
    %v196 = vld [vmem:[#allocation5 + $0x160] sm:$0xf]
    %v197 = vld [vmem:[#allocation5 + $0x164] sm:$0xf]
    %v198 = vld [vmem:[#allocation5 + $0x168] sm:$0xf]
    %v199 = vld [vmem:[#allocation5 + $0x16c] sm:$0xf]
    %v200 = vld [vmem:[#allocation5 + $0x170] sm:$0xf]
    %v201 = vld [vmem:[#allocation5 + $0x174] sm:$0xf]
    %v202 = vld [vmem:[#allocation5 + $0x178] sm:$0xf]
    %v203 = vld [vmem:[#allocation5 + $0x17c] sm:$0xf]
    %v204 = vld [vmem:[#allocation5 + $0x180] sm:$0xf]
    %v205 = vld [vmem:[#allocation5 + $0x184] sm:$0xf]
    %v304 = vunpack.c.l.b16 %v108
    %v305 = vunpack.c.l.b16 %v109
    %v306 = vunpack.c.l.b16 %v110
    %v307 = vunpack.c.l.b16 %v111
    %v308 = vunpack.c.l.b16 %v112
    %v309 = vunpack.c.l.b16 %v113
    %v310 = vunpack.c.l.b16 %v114
    %v311 = vunpack.c.l.b16 %v115
    %v312 = vunpack.c.l.b16 %v116
    %v313 = vunpack.c.l.b16 %v117
    %v314 = vunpack.c.l.b16 %v118
    %v315 = vunpack.c.l.b16 %v119
    %v316 = vunpack.c.l.b16 %v120
    %v317 = vunpack.c.l.b16 %v121
    %v318 = vunpack.c.l.b16 %v122
    %v319 = vunpack.c.l.b16 %v123
    %v320 = vunpack.c.l.b16 %v124
    %v321 = vunpack.c.l.b16 %v125
    %v322 = vunpack.c.l.b16 %v126
    %v323 = vunpack.c.l.b16 %v127
    %v324 = vunpack.c.l.b16 %v128
    %v325 = vunpack.c.l.b16 %v129
    %v326 = vunpack.c.l.b16 %v130
    %v327 = vunpack.c.l.b16 %v131
    %v328 = vunpack.c.l.b16 %v132
    %v329 = vunpack.c.l.b16 %v133
    %v330 = vunpack.c.l.b16 %v134
    %v331 = vunpack.c.l.b16 %v135
    %v332 = vunpack.c.l.b16 %v136
    %v333 = vunpack.c.l.b16 %v137
    %v334 = vunpack.c.l.b16 %v138
    %v335 = vunpack.c.l.b16 %v139
    %v336 = vunpack.c.l.b16 %v140
    %v337 = vunpack.c.l.b16 %v141
    %v338 = vunpack.c.l.b16 %v142
    %v339 = vunpack.c.l.b16 %v143
    %v340 = vunpack.c.l.b16 %v144
    %v341 = vunpack.c.l.b16 %v145
    %v342 = vunpack.c.l.b16 %v146
    %v343 = vunpack.c.l.b16 %v147
    %v344 = vunpack.c.l.b16 %v148
    %v345 = vunpack.c.l.b16 %v149
    %v346 = vunpack.c.l.b16 %v150
    %v347 = vunpack.c.l.b16 %v151
    %v348 = vunpack.c.l.b16 %v152
    %v349 = vunpack.c.l.b16 %v153
    %v350 = vunpack.c.l.b16 %v154
    %v351 = vunpack.c.l.b16 %v155
    %v352 = vunpack.c.l.b16 %v156
    %v353 = vunpack.c.l.b16 %v157
    %v354 = vunpack.c.l.b16 %v158
    %v355 = vunpack.c.l.b16 %v159
    %v356 = vunpack.c.l.b16 %v160
    %v357 = vunpack.c.l.b16 %v161
    %v358 = vunpack.c.l.b16 %v162
    %v359 = vunpack.c.l.b16 %v163
    %v360 = vunpack.c.l.b16 %v164
    %v361 = vunpack.c.l.b16 %v165
    %v362 = vunpack.c.l.b16 %v166
    %v363 = vunpack.c.l.b16 %v167
    %v364 = vunpack.c.l.b16 %v168
    %v365 = vunpack.c.l.b16 %v169
    %v366 = vunpack.c.l.b16 %v170
    %v367 = vunpack.c.l.b16 %v171
    %v368 = vunpack.c.l.b16 %v172
    %v369 = vunpack.c.l.b16 %v173
    %v370 = vunpack.c.l.b16 %v174
    %v371 = vunpack.c.l.b16 %v175
    %v372 = vunpack.c.l.b16 %v176
    %v373 = vunpack.c.l.b16 %v177
    %v374 = vunpack.c.l.b16 %v178
    %v375 = vunpack.c.l.b16 %v179
    %v376 = vunpack.c.l.b16 %v180
    %v377 = vunpack.c.l.b16 %v181
    %v378 = vunpack.c.l.b16 %v182
    %v379 = vunpack.c.l.b16 %v183
    %v380 = vunpack.c.l.b16 %v184
    %v381 = vunpack.c.l.b16 %v185
    %v382 = vunpack.c.l.b16 %v186
    %v383 = vunpack.c.l.b16 %v187
    %v384 = vunpack.c.l.b16 %v188
    %v385 = vunpack.c.l.b16 %v189
    %v386 = vunpack.c.l.b16 %v190
    %v387 = vunpack.c.l.b16 %v191
    %v388 = vunpack.c.l.b16 %v192
    %v389 = vunpack.c.l.b16 %v193
    %v390 = vunpack.c.l.b16 %v194
    %v391 = vunpack.c.l.b16 %v195
    %v392 = vunpack.c.l.b16 %v196
    %v393 = vunpack.c.l.b16 %v197
    %v394 = vunpack.c.l.b16 %v198
    %v395 = vunpack.c.l.b16 %v199
    %v396 = vunpack.c.l.b16 %v200
    %v397 = vunpack.c.l.b16 %v201
    %v398 = vunpack.c.l.b16 %v202
    %v399 = vunpack.c.l.b16 %v203
    %v400 = vunpack.c.l.b16 %v204
    %v401 = vunpack.c.l.b16 %v205
    %v402 = vpack.c.b16 %v305, %v304
    %v403 = vpack.c.b16 %v307, %v306
    %v404 = vpack.c.b16 %v309, %v308
    %v405 = vpack.c.b16 %v311, %v310
    %v406 = vpack.c.b16 %v313, %v312
    %v407 = vpack.c.b16 %v315, %v314
    %v408 = vpack.c.b16 %v317, %v316
    %v409 = vpack.c.b16 %v319, %v318
    %v410 = vpack.c.b16 %v321, %v320
    %v411 = vpack.c.b16 %v323, %v322
    %v412 = vpack.c.b16 %v325, %v324
    %v413 = vpack.c.b16 %v327, %v326
    %v414 = vpack.c.b16 %v329, %v328
    %v415 = vpack.c.b16 %v331, %v330
    %v416 = vpack.c.b16 %v333, %v332
    %v417 = vpack.c.b16 %v335, %v334
    %v418 = vpack.c.b16 %v337, %v336
    %v419 = vpack.c.b16 %v339, %v338
    %v420 = vpack.c.b16 %v341, %v340
    %v421 = vpack.c.b16 %v343, %v342
    %v422 = vpack.c.b16 %v345, %v344
    %v423 = vpack.c.b16 %v347, %v346
    %v424 = vpack.c.b16 %v349, %v348
    %v425 = vpack.c.b16 %v351, %v350
    %v426 = vpack.c.b16 %v353, %v352
    %v427 = vpack.c.b16 %v355, %v354
    %v428 = vpack.c.b16 %v357, %v356
    %v429 = vpack.c.b16 %v359, %v358
    %v430 = vpack.c.b16 %v361, %v360
    %v431 = vpack.c.b16 %v363, %v362
    %v432 = vpack.c.b16 %v365, %v364
    %v433 = vpack.c.b16 %v367, %v366
    %v434 = vpack.c.b16 %v369, %v368
    %v435 = vpack.c.b16 %v371, %v370
    %v436 = vpack.c.b16 %v373, %v372
    %v437 = vpack.c.b16 %v375, %v374
    %v438 = vpack.c.b16 %v377, %v376
    %v439 = vpack.c.b16 %v379, %v378
    %v440 = vpack.c.b16 %v381, %v380
    %v441 = vpack.c.b16 %v383, %v382
    %v442 = vpack.c.b16 %v385, %v384
    %v443 = vpack.c.b16 %v387, %v386
    %v444 = vpack.c.b16 %v389, %v388
    %v445 = vpack.c.b16 %v391, %v390
    %v446 = vpack.c.b16 %v393, %v392
    %v447 = vpack.c.b16 %v395, %v394
    %v448 = vpack.c.b16 %v397, %v396
    %v449 = vpack.c.b16 %v399, %v398
    %v450 = vpack.c.b16 %v401, %v400
    %vm500 = vcmask 130048
    %v502 = vsel %vm500, %v107, 0
    %504 = vmatpush.bf16.msra.mxu0 %v409
    %505 = vmatpush.bf16.msra.mxu0 %v408
    %506 = vmatpush.bf16.msra.mxu0 %v407
    %507 = vmatpush.bf16.msra.mxu0 %v406
    %508 = vmatpush.bf16.msra.mxu0 %v405
    %509 = vmatpush.bf16.msra.mxu0 %v404
    %510 = vmatpush.bf16.msra.mxu0 %v403
    %511 = vmatpush.bf16.msra.mxu0 %v402
    %512 = vmatmul.bf16.gmra.mxu0 %v101
    %v513 = vpop.f32.mrf.mxu0
    %v514 = vadd.f32 0.0, %v513
    %v515 = vpop.f32.mrf.mxu0
    %516 = vdwg.mxu0
    %517 = vmatpush.bf16.msra.mxu0 %v417
    %518 = vmatpush.bf16.msra.mxu0 %v416
    %519 = vmatpush.bf16.msra.mxu0 %v415
    %520 = vmatpush.bf16.msra.mxu0 %v414
    %521 = vmatpush.bf16.msra.mxu0 %v413
    %522 = vmatpush.bf16.msra.mxu0 %v412
    %523 = vmatpush.bf16.msra.mxu0 %v411
    %524 = vmatpush.bf16.msra.mxu0 %v410
    %525 = vmatmul.bf16.gmra.mxu0 %v102
    %v526 = vpop.f32.mrf.mxu0
    %v527 = vadd.f32 %v514, %v526
    %v528 = vpop.f32.mrf.mxu0
    %529 = vdwg.mxu0
    %530 = vmatpush.bf16.msra.mxu0 %v425
    %531 = vmatpush.bf16.msra.mxu0 %v424
    %532 = vmatpush.bf16.msra.mxu0 %v423
    %533 = vmatpush.bf16.msra.mxu0 %v422
    %534 = vmatpush.bf16.msra.mxu0 %v421
    %535 = vmatpush.bf16.msra.mxu0 %v420
    %536 = vmatpush.bf16.msra.mxu0 %v419
    %537 = vmatpush.bf16.msra.mxu0 %v418
    %538 = vmatmul.bf16.gmra.mxu0 %v103
    %v539 = vpop.f32.mrf.mxu0
    %v540 = vadd.f32 %v527, %v539
    %v541 = vpop.f32.mrf.mxu0
    %542 = vdwg.mxu0
    %543 = vmatpush.bf16.msra.mxu0 %v433
    %544 = vmatpush.bf16.msra.mxu0 %v432
    %545 = vmatpush.bf16.msra.mxu0 %v431
    %546 = vmatpush.bf16.msra.mxu0 %v430
    %547 = vmatpush.bf16.msra.mxu0 %v429
    %548 = vmatpush.bf16.msra.mxu0 %v428
    %549 = vmatpush.bf16.msra.mxu0 %v427
    %550 = vmatpush.bf16.msra.mxu0 %v426
    %551 = vmatmul.bf16.gmra.mxu0 %v104
    %v552 = vpop.f32.mrf.mxu0
    %v553 = vadd.f32 %v540, %v552
    %v554 = vpop.f32.mrf.mxu0
    %555 = vdwg.mxu0
    %556 = vmatpush.bf16.msra.mxu0 %v441
    %557 = vmatpush.bf16.msra.mxu0 %v440
    %558 = vmatpush.bf16.msra.mxu0 %v439
    %559 = vmatpush.bf16.msra.mxu0 %v438
    %560 = vmatpush.bf16.msra.mxu0 %v437
    %561 = vmatpush.bf16.msra.mxu0 %v436
    %562 = vmatpush.bf16.msra.mxu0 %v435
    %563 = vmatpush.bf16.msra.mxu0 %v434
    %564 = vmatmul.bf16.gmra.mxu0 %v105
    %v565 = vpop.f32.mrf.mxu0
    %v566 = vadd.f32 %v553, %v565
    %v567 = vpop.f32.mrf.mxu0
    %568 = vdwg.mxu0
    %569 = vmatpush.bf16.msra.mxu0 %v449
    %570 = vmatpush.bf16.msra.mxu0 %v448
    %571 = vmatpush.bf16.msra.mxu0 %v447
    %572 = vmatpush.bf16.msra.mxu0 %v446
    %573 = vmatpush.bf16.msra.mxu0 %v445
    %574 = vmatpush.bf16.msra.mxu0 %v444
    %575 = vmatpush.bf16.msra.mxu0 %v443
    %576 = vmatpush.bf16.msra.mxu0 %v442
    %577 = vmatmul.bf16.gmra.mxu0 %v106
    %v578 = vpop.f32.mrf.mxu0
    %v579 = vadd.f32 %v566, %v578
    %v580 = vpop.f32.mrf.mxu0
    %581 = vdwg.mxu0
    %582 = vmatpush.bf16.msra.mxu0 0
    %583 = vmatpush.bf16.msra.mxu0 0
    %584 = vmatpush.bf16.msra.mxu0 0
    %585 = vmatpush.bf16.msra.mxu0 0
    %586 = vmatpush.bf16.msra.mxu0 0
    %587 = vmatpush.bf16.msra.mxu0 0
    %588 = vmatpush.bf16.msra.mxu0 0
    %589 = vmatpush.bf16.msra.mxu0 %v450
    %590 = vmatmul.bf16.gmra.mxu0 %v502
    %v591 = vpop.f32.mrf.mxu0
    %v592 = vadd.f32 %v579, %v591
    %v593 = vpop.f32.mrf.mxu0
    %594 = vdwg.mxu0
    %v595 = vmax.f32 %v592, 0.0
    %v596 = vpack.c.bf16 %v595, %v595
    %v597 = vld [vmem:[#allocation7] sm:$0xf]
    %v598 = vld [vmem:[#allocation7 + $0x4] sm:$0xf]
    %v599 = vld [vmem:[#allocation7 + $0x8] sm:$0xf]
    %v600 = vld [vmem:[#allocation7 + $0xc] sm:$0xf]
    %v601 = vld [vmem:[#allocation7 + $0x10] sm:$0xf]
    %v602 = vld [vmem:[#allocation7 + $0x14] sm:$0xf]
    %v603 = vld [vmem:[#allocation7 + $0x18] sm:$0xf]
    %v604 = vld [vmem:[#allocation7 + $0x1c] sm:$0xf]
    %v605 = vld [vmem:[#allocation7 + $0x20] sm:$0xf]
    %v606 = vld [vmem:[#allocation7 + $0x24] sm:$0xf]
    %v607 = vld [vmem:[#allocation7 + $0x28] sm:$0xf]
    %v608 = vld [vmem:[#allocation7 + $0x2c] sm:$0xf]
    %v609 = vld [vmem:[#allocation7 + $0x30] sm:$0xf]
    %v610 = vld [vmem:[#allocation7 + $0x34] sm:$0xf]
    %v611 = vld [vmem:[#allocation7 + $0x38] sm:$0xf]
    %v612 = vld [vmem:[#allocation7 + $0x3c] sm:$0xf]
    %v629 = vunpack.c.l.b16 %v597
    %v630 = vunpack.c.l.b16 %v598
    %v631 = vunpack.c.l.b16 %v599
    %v632 = vunpack.c.l.b16 %v600
    %v633 = vunpack.c.l.b16 %v601
    %v634 = vunpack.c.l.b16 %v602
    %v635 = vunpack.c.l.b16 %v603
    %v636 = vunpack.c.l.b16 %v604
    %v637 = vunpack.c.l.b16 %v605
    %v638 = vunpack.c.l.b16 %v606
    %v639 = vunpack.c.l.b16 %v607
    %v640 = vunpack.c.l.b16 %v608
    %v641 = vunpack.c.l.b16 %v609
    %v642 = vunpack.c.l.b16 %v610
    %v643 = vunpack.c.l.b16 %v611
    %v644 = vunpack.c.l.b16 %v612
    %v645 = vpack.c.b16 %v630, %v629
    %v646 = vpack.c.b16 %v632, %v631
    %v647 = vpack.c.b16 %v634, %v633
    %v648 = vpack.c.b16 %v636, %v635
    %v649 = vpack.c.b16 %v638, %v637
    %v650 = vpack.c.b16 %v640, %v639
    %v651 = vpack.c.b16 %v642, %v641
    %v652 = vpack.c.b16 %v644, %v643
    %661 = vmatpush.bf16.msra.mxu0 %v652
    %662 = vmatpush.bf16.msra.mxu0 %v651
    %663 = vmatpush.bf16.msra.mxu0 %v650
    %664 = vmatpush.bf16.msra.mxu0 %v649
    %665 = vmatpush.bf16.msra.mxu0 %v648
    %666 = vmatpush.bf16.msra.mxu0 %v647
    %667 = vmatpush.bf16.msra.mxu0 %v646
    %668 = vmatpush.bf16.msra.mxu0 %v645
    %669 = vmatmul.bf16.gmra.mxu0 %v596
    %v670 = vpop.f32.mrf.mxu0
    %v671 = vadd.f32 0.0, %v670
    %v672 = vpop.f32.mrf.mxu0
    %673 = vdwg.mxu0
    %v674 = vmax.f32 %v671, 0.0
    %v675 = vpack.c.bf16 %v674, %v674
    %v676 = vld [vmem:[#allocation8] sm:$0xf]
    %v677 = vld [vmem:[#allocation8 + $0x4] sm:$0xf]
    %v678 = vld [vmem:[#allocation8 + $0x8] sm:$0xf]
    %v679 = vld [vmem:[#allocation8 + $0xc] sm:$0xf]
    %v680 = vld [vmem:[#allocation8 + $0x10] sm:$0xf]
    %v681 = vld [vmem:[#allocation8 + $0x14] sm:$0xf]
    %v682 = vld [vmem:[#allocation8 + $0x18] sm:$0xf]
    %v683 = vld [vmem:[#allocation8 + $0x1c] sm:$0xf]
    %v684 = vld [vmem:[#allocation8 + $0x20] sm:$0xf]
    %v685 = vld [vmem:[#allocation8 + $0x24] sm:$0xf]
    %v686 = vld [vmem:[#allocation8 + $0x28] sm:$0xf]
    %v687 = vld [vmem:[#allocation8 + $0x2c] sm:$0xf]
    %v688 = vld [vmem:[#allocation8 + $0x30] sm:$0xf]
    %v689 = vld [vmem:[#allocation8 + $0x34] sm:$0xf]
    %v690 = vld [vmem:[#allocation8 + $0x38] sm:$0xf]
    %v691 = vld [vmem:[#allocation8 + $0x3c] sm:$0xf]
    %v708 = vunpack.c.l.b16 %v676
    %v709 = vunpack.c.l.b16 %v677
    %v710 = vunpack.c.l.b16 %v678
    %v711 = vunpack.c.l.b16 %v679
    %v712 = vunpack.c.l.b16 %v680
    %v713 = vunpack.c.l.b16 %v681
    %v714 = vunpack.c.l.b16 %v682
    %v715 = vunpack.c.l.b16 %v683
    %v716 = vunpack.c.l.b16 %v684
    %v717 = vunpack.c.l.b16 %v685
    %v718 = vunpack.c.l.b16 %v686
    %v719 = vunpack.c.l.b16 %v687
    %v720 = vunpack.c.l.b16 %v688
    %v721 = vunpack.c.l.b16 %v689
    %v722 = vunpack.c.l.b16 %v690
    %v723 = vunpack.c.l.b16 %v691
    %v724 = vpack.c.b16 %v709, %v708
    %v725 = vpack.c.b16 %v711, %v710
    %v726 = vpack.c.b16 %v713, %v712
    %v727 = vpack.c.b16 %v715, %v714
    %v728 = vpack.c.b16 %v717, %v716
    %v729 = vpack.c.b16 %v719, %v718
    %v730 = vpack.c.b16 %v721, %v720
    %v731 = vpack.c.b16 %v723, %v722
    %740 = vmatpush.bf16.msra.mxu0 %v731
    %741 = vmatpush.bf16.msra.mxu0 %v730
    %742 = vmatpush.bf16.msra.mxu0 %v729
    %743 = vmatpush.bf16.msra.mxu0 %v728
    %744 = vmatpush.bf16.msra.mxu0 %v727
    %745 = vmatpush.bf16.msra.mxu0 %v726
    %746 = vmatpush.bf16.msra.mxu0 %v725
    %747 = vmatpush.bf16.msra.mxu0 %v724
    %748 = vmatmul.bf16.gmra.mxu0 %v675
    %v749 = vpop.f32.mrf.mxu0
    %v750 = vadd.f32 0.0, %v749
    %v751 = vpop.f32.mrf.mxu0
    %752 = vdwg.mxu0
    %753 = vst [vmem:[#allocation10] sm:$0x3] %v750
    // Predicated region
    $region34: #{tpu_custom_call.1} parent=1 // pred_check
      _
    $region35: #{tpu_custom_call.1} parent=1 // pred_check_branch
      %755 = sbr.rel (0) target = $region37
    $region36: #{tpu_custom_call.1} parent=1 // pred_region
      %757 = vsyncadd [#allocation4], 0
      %s759 = sshll.u32 [#allocation10], 4
      %s760 = int_to_ptr.vmem [resolvable:$true] %s759
      %s761 = sshll.u32 %s4, 4
      %s762 = int_to_ptr.hbm [resolvable:$true] %s761
      %764 = dma.vmem_to_hbm [thread:$0]  %s760, 32, %s762, [#allocation4]
    $region37: #{tpu_custom_call.1} parent=1 // pred_fallthru
      _
    // Predicated region
    $region38: #{tpu_custom_call.1} parent=1 // pred_check
      _
    $region39: #{tpu_custom_call.1} parent=1 // pred_check_branch
      %766 = sbr.rel (0) target = $region41
    $region40: #{tpu_custom_call.1} parent=1 // pred_region
      %768 = dma.done [#allocation4], 32
    $region41: #{tpu_custom_call.1} parent=1 // pred_fallthru
      _
    %769 = vsyncpa [#allocation3], 1
    %770 = vsyncpa [#allocation6], 1
    %771 = vsyncpa [#allocation9], 1
    %772 = vsyncpa [#allocation4], 1

</llo_original>
